<compile_context>
chip_gen: v7x
topology: tpu7x:2x2x1
jax: 0.10.0
libtpu: 0.0.40
codegen_flags: <defaults>
</compile_context>

<pallas_src>
import jax
import jax.numpy as jnp
from jax.experimental import pallas as pl
from jax.experimental.pallas import tpu as pltpu


def _simple_with_leaf_kernel(w_ref, x_ref, o_ref):
    # out = weight + (1 + input); single VPU pass per tile, dtype-generic.
    one = jnp.asarray(1, dtype=x_ref.dtype)
    o_ref[...] = (w_ref[...] + (x_ref[...] + one)).astype(o_ref.dtype)


# Single whole-array block only for truly tiny problems (e.g. the 8x32 module
# shape); anything spanning a couple of tiles of work goes through the
# pipelined path so read-DMA / add / write-DMA overlap.
_SMALL_TOTAL_BYTES = 256 * 1024  # total over all three arrays


def _round_down_mult(x: int, m: int) -> int:
    return (x // m) * m


def _round_up_mult(x: int, m: int) -> int:
    return ((x + m - 1) // m) * m


def _tile_budget_and_vmem_limit():
    """Per-array tile budget (bytes) and scoped-VMEM limit, per generation.

    3 arrays x 2 pipeline buffers x budget must stay well under the limit,
    and the limit must stay under physical VMEM on every generation.
    """
    try:
        vmem_phys = pltpu.get_tpu_info().vmem_capacity_bytes
    except Exception:  # query unavailable -> conservative default
        vmem_phys = None
    if vmem_phys is not None and vmem_phys >= 100 * 1024 * 1024:
        # v5e / v6e (128 MiB physical): 8 MiB tiles -> 48 MiB of buffers.
        # Explicit limit so v5e's 16 MiB scoped default is not silently hit.
        return 8 * 1024 * 1024, 64 << 20
    # v7x (64 MiB per TensorCore) or unknown chip: 4 MiB tiles -> 24 MiB.
    return 4 * 1024 * 1024, 40 << 20


def _maybe_lane_dense_slab(N: int, M: int):
    """If the last dim is not lane-dense, return a (rows, L) slab view shape."""
    if M % 128 == 0:
        return None
    total = N * M
    if total % 128 != 0:
        return None
    for L in (4096, 2048, 1024, 512, 256, 128):
        if total % L == 0:
            return (total // L, L)
    return None


def _choose_tiles(N: int, M: int, itemsize: int, budget: int):
    """Pick (TN, TM): prefer full-row contiguous tiles, shrink rows first."""
    row_bytes = M * itemsize
    if row_bytes * min(N, 8) <= budget:
        # A full-width stripe of at least 8 rows (or all of N) fits.
        TM = M
        rows_fit = budget // row_bytes
        TN = N if rows_fit >= N else _round_down_mult(rows_fit, 8)
    else:
        # One 8-row full-width stripe is too big: split the lane dim too.
        TN = min(N, 8)
        cols_fit = budget // (TN * itemsize)
        TM = M if cols_fit >= M else max(128, _round_down_mult(cols_fit, 128))

    # Keep >= 2 grid steps along a parallel axis for medium arrays so v7x's
    # second TensorCore is not idle (no-op on single-TC v5e/v6e).
    if pl.cdiv(N, TN) == 1 and pl.cdiv(M, TM) == 1:
        if N >= 16:
            TN = _round_up_mult(pl.cdiv(N, 2), 8)
        elif M >= 256:
            TM = _round_up_mult(pl.cdiv(M, 2), 128)
    return TN, TM


def simple_with_leaf(weight: jax.Array, x: jax.Array) -> jax.Array:
    assert weight.ndim == 2, "weight must be (N, M)"
    assert weight.shape == x.shape, "weight and input must have matching (N, M)"
    assert weight.dtype == x.dtype, "weight and input must share a dtype"
    N, M = weight.shape
    itemsize = jnp.dtype(weight.dtype).itemsize
    total_bytes = 3 * N * M * itemsize
    cost = pl.CostEstimate(
        flops=2 * N * M, transcendentals=0, bytes_accessed=total_bytes
    )

    if total_bytes <= _SMALL_TOTAL_BYTES:
        # Tiny case: whole arrays resident in VMEM, one grid step of overhead.
        return pl.pallas_call(
            _simple_with_leaf_kernel,
            out_shape=jax.ShapeDtypeStruct((N, M), weight.dtype),
            in_specs=[
                pl.BlockSpec(memory_space=pltpu.MemorySpace.VMEM),
                pl.BlockSpec(memory_space=pltpu.MemorySpace.VMEM),
            ],
            out_specs=pl.BlockSpec(memory_space=pltpu.MemorySpace.VMEM),
            cost_estimate=cost,
        )(weight, x)

    # Lane-dense reshape for narrow / ragged last dims (free row-major view
    # outside the kernel; elementwise op is layout-agnostic).
    slab = _maybe_lane_dense_slab(N, M)
    if slab is not None:
        Nk, Mk = slab
        w_in, x_in = weight.reshape(Nk, Mk), x.reshape(Nk, Mk)
    else:
        Nk, Mk = N, M
        w_in, x_in = weight, x

    budget, vmem_limit = _tile_budget_and_vmem_limit()
    TN, TM = _choose_tiles(Nk, Mk, itemsize, budget)
    grid = (pl.cdiv(Nk, TN), pl.cdiv(Mk, TM))

    out = pl.pallas_call(
        _simple_with_leaf_kernel,
        out_shape=jax.ShapeDtypeStruct((Nk, Mk), weight.dtype),
        grid=grid,
        in_specs=[
            pl.BlockSpec((TN, TM), lambda i, j: (i, j)),
            pl.BlockSpec((TN, TM), lambda i, j: (i, j)),
        ],
        out_specs=pl.BlockSpec((TN, TM), lambda i, j: (i, j)),
        compiler_params=pltpu.CompilerParams(
            # Both axes independent -> shard across v7x's two TensorCores.
            dimension_semantics=("parallel", "parallel"),
            vmem_limit_bytes=vmem_limit,
        ),
        cost_estimate=cost,
    )(w_in, x_in)

    return out.reshape(N, M) if slab is not None else out


if __name__ == "__main__":
    key = jax.random.PRNGKey(0)
    k_w, k_x, k_w2, k_x2, k_w3, k_x3 = jax.random.split(key, 6)

    # --- Case 1: the module's literal small shape (N=8, M=32) --------------
    N, M = 8, 32
    weight = jax.random.uniform(k_w, (N, M), dtype=jnp.float32)  # torch.rand-style
    x = jax.random.normal(k_x, (N, M), dtype=jnp.float32)
    out = jax.block_until_ready(simple_with_leaf(weight, x))
    ref = weight + (1.0 + x)
    assert out.shape == (N, M)
    assert jnp.allclose(out, ref, atol=1e-6, rtol=1e-6)

    # --- Case 2: tiled / pipelined path with a >=2-step parallel grid ------
    N2, M2 = 512, 1024
    weight2 = jax.random.uniform(k_w2, (N2, M2), dtype=jnp.float32)
    x2 = jax.random.normal(k_x2, (N2, M2), dtype=jnp.float32)
    out2 = jax.block_until_ready(simple_with_leaf(weight2, x2))
    ref2 = weight2 + (1.0 + x2)
    assert out2.shape == (N2, M2)
    assert jnp.allclose(out2, ref2, atol=1e-6, rtol=1e-6)

    # --- Case 3: narrow last dim -> lane-dense slab reshape path -----------
    N3, M3 = 2048, 64
    weight3 = jax.random.uniform(k_w3, (N3, M3), dtype=jnp.float32)
    x3 = jax.random.normal(k_x3, (N3, M3), dtype=jnp.float32)
    out3 = jax.block_until_ready(simple_with_leaf(weight3, x3))
    ref3 = weight3 + (1.0 + x3)
    assert out3.shape == (N3, M3)
    assert jnp.allclose(out3, ref3, atol=1e-6, rtol=1e-6)

    print("KERNEL_OK")
</pallas_src>

<mosaic_0001>
module attributes {stable_mosaic.version = 11 : i64} {
  func.func @_simple_with_leaf_kernel(%arg0: memref<8x32xf32, #tpu.memory_space<vmem>>, %arg1: memref<8x32xf32, #tpu.memory_space<vmem>>, %arg2: memref<8x32xf32, #tpu.memory_space<vmem>>) attributes {dimension_semantics = [], scalar_prefetch = 0 : i64, scratch_operands = 0 : i64, tpu.core_type = #tpu.core_type<tc>} {
    %c0 = arith.constant 0 : index
    %c0_0 = arith.constant 0 : index
    %0 = vector.load %arg0[%c0, %c0_0] : memref<8x32xf32, #tpu.memory_space<vmem>>, vector<8x32xf32>
    %c0_1 = arith.constant 0 : index
    %c0_2 = arith.constant 0 : index
    %1 = vector.load %arg1[%c0_1, %c0_2] : memref<8x32xf32, #tpu.memory_space<vmem>>, vector<8x32xf32>
    %cst = arith.constant 1.000000e+00 : f32
    %2 = vector.broadcast %cst : f32 to vector<8x32xf32>
    %3 = arith.addf %1, %2 : vector<8x32xf32>
    %4 = arith.addf %0, %3 : vector<8x32xf32>
    %c0_3 = arith.constant 0 : index
    %c0_4 = arith.constant 0 : index
    %5 = vector.load %arg2[%c0_3, %c0_4] : memref<8x32xf32, #tpu.memory_space<vmem>>, vector<8x32xf32>
    tpu.vector_store %arg2[%c0_3, %c0_4], %4 {strides = array<i32>} : memref<8x32xf32, #tpu.memory_space<vmem>>, vector<8x32xf32>,
    return
  }
}

</mosaic_0001>

<llo_original>
// kernel: tpu_custom_call.1
$region0: #{tpu_custom_call.1}
  #allocation0 [shape = 'u32[]', space=smem, size = 0x4, offset = 0x4, fixed_abs, tag = 'smem constant byte address 0x4 - core index']
  #allocation1 [shape = 'u32[144,128]{1,0:T(1,128)}', space=vmem, size = 0x12000, scoped, tag = 'internal scratch']
  %s0 = inlined_call_operand.hbm [shape: f32[8,32], index: 0, kind: input, shape index: {}]
  %s1 = inlined_call_operand.hbm [shape: f32[8,32], index: 1, kind: input, shape index: {}]
  %s2 = inlined_call_operand.hbm [shape: f32[8,32], index: 2, kind: output, shape index: {}]
  %s3 = sld [smem:[#allocation0]]
  $region26: #{tpu_custom_call.1} parent=0
    _
  %s5 = ssub.s32 1, %s3
  %s6 = scalar_select 0, %s5, %s3
  $region1: #{tpu_custom_call.1} parent=0
    #allocation2 [shape = 'u8[4096]{0}', space=vmem, size = 0x1000, scoped, tag = 'input window, operand 0, single buffered']
    #allocation3 [shape = 's32[1]{0}', space=sflag, size = 0x4, scoped, tag = 'scoped memory for tpu_custom_call.1']
    #allocation4 [shape = 's32[1]{0}', space=sflag, size = 0x4, scoped, tag = 'scoped memory for tpu_custom_call.1']
    #allocation5 [shape = 'u8[4096]{0}', space=vmem, size = 0x1000, scoped, tag = 'input window, operand 1, single buffered']
    #allocation6 [shape = 's32[1]{0}', space=sflag, size = 0x4, scoped, tag = 'scoped memory for tpu_custom_call.1']
    #allocation7 [shape = 'u8[4096]{0}', space=vmem, size = 0x1000, scoped, tag = 'output window, operand 0, single buffered']
    %7 = vsyncpa [#allocation3], 0
    %8 = vsyncpa [#allocation6], 0
    %9 = vsyncpa [#allocation4], 0
    // Predicated region
    $region2: #{tpu_custom_call.1} parent=1 // pred_check
      _
    $region3: #{tpu_custom_call.1} parent=1 // pred_check_branch
      %11 = sbr.rel (0) target = $region5
    $region4: #{tpu_custom_call.1} parent=1 // pred_region
      %s13 = ssub.s32 128, 128
      %14 = vsyncadd [#allocation3], %s13
      %s16 = sshll.u32 [#allocation2], 4
      %s17 = int_to_ptr.vmem [resolvable:$true] %s16
      %19 = dma.hbm_to_vmem [thread:$0]  %s0, 128, %s17, [#allocation3]
    $region5: #{tpu_custom_call.1} parent=1 // pred_fallthru
      _
    // Predicated region
    $region6: #{tpu_custom_call.1} parent=1 // pred_check
      _
    $region7: #{tpu_custom_call.1} parent=1 // pred_check_branch
      %21 = sbr.rel (0) target = $region9
    $region8: #{tpu_custom_call.1} parent=1 // pred_region
      %s23 = ssub.s32 128, 128
      %24 = vsyncadd [#allocation6], %s23
      %s26 = sshll.u32 [#allocation5], 4
      %s27 = int_to_ptr.vmem [resolvable:$true] %s26
      %29 = dma.hbm_to_vmem [thread:$0]  %s1, 128, %s27, [#allocation6]
    $region9: #{tpu_custom_call.1} parent=1 // pred_fallthru
      _
    // Predicated region
    $region10: #{tpu_custom_call.1} parent=1 // pred_check
      _
    $region11: #{tpu_custom_call.1} parent=1 // pred_check_branch
      %31 = sbr.rel (0) target = $region13
    $region12: #{tpu_custom_call.1} parent=1 // pred_region
      %32 = dma.done [#allocation3], 128
    $region13: #{tpu_custom_call.1} parent=1 // pred_fallthru
      _
    // Predicated region
    $region14: #{tpu_custom_call.1} parent=1 // pred_check
      _
    $region15: #{tpu_custom_call.1} parent=1 // pred_check_branch
      %34 = sbr.rel (0) target = $region17
    $region16: #{tpu_custom_call.1} parent=1 // pred_region
      %35 = dma.done [#allocation6], 128
    $region17: #{tpu_custom_call.1} parent=1 // pred_fallthru
      _
    %v36 = vld [vmem:[#allocation2] sm:$0xff]
    %v37 = vld [vmem:[#allocation5] sm:$0xff]
    %v38 = vadd.f32 %v37, 1.0
    %v39 = vadd.f32 %v36, %v38
    %vm40 = vcmask 261120
    %41 = vst.msk [vmem:[#allocation7] sm:$0xff] %vm40, %v39
    // Predicated region
    $region18: #{tpu_custom_call.1} parent=1 // pred_check
      _
    $region19: #{tpu_custom_call.1} parent=1 // pred_check_branch
      %43 = sbr.rel (0) target = $region21
    $region20: #{tpu_custom_call.1} parent=1 // pred_region
      %s45 = ssub.s32 128, 128
      %46 = vsyncadd [#allocation4], %s45
      %s48 = sshll.u32 [#allocation7], 4
      %s49 = int_to_ptr.vmem [resolvable:$true] %s48
      %51 = dma.vmem_to_hbm [thread:$0]  %s49, 128, %s2, [#allocation4]
    $region21: #{tpu_custom_call.1} parent=1 // pred_fallthru
      _
    // Predicated region
    $region22: #{tpu_custom_call.1} parent=1 // pred_check
      _
    $region23: #{tpu_custom_call.1} parent=1 // pred_check_branch
      %53 = sbr.rel (0) target = $region25
    $region24: #{tpu_custom_call.1} parent=1 // pred_region
      %54 = dma.done [#allocation4], 128
    $region25: #{tpu_custom_call.1} parent=1 // pred_fallthru
      _
    %55 = vsyncpa [#allocation3], 1
    %56 = vsyncpa [#allocation6], 1
    %57 = vsyncpa [#allocation4], 1

</llo_original>
